<compile_context>
chip_gen: v7x
topology: tpu7x:2x2x1
jax: 0.10.0
libtpu: 0.0.40
codegen_flags: <defaults>
</compile_context>

<pallas_src>
import functools

import jax
import jax.numpy as jnp
from jax.experimental import pallas as pl
from jax.experimental.pallas import tpu as pltpu


_LANE = 128
_MAX_TILE_N = 2048              # max output lanes per grid step (multiple of 128)
_TILE_VMEM_BUDGET = 32 << 20    # budget: double-buffered x/out tiles + resident W


def _downpool_kernel(w_ref, b_ref, x_ref, o_ref):
    """One (batch, lane-tile) grid step.

    w_ref: (Dout, U)   weight-normalized weight (resident block)
    b_ref: (Dout, 1)   bias (resident block)
    x_ref: (U, TN)     rearranged input tile (batch dim squeezed)
    o_ref: (Dout, TN)  output tile (batch dim squeezed)
    """
    o_ref[...] = (
        jnp.dot(w_ref[...], x_ref[...], preferred_element_type=jnp.float32)
        + b_ref[...]
    ).astype(o_ref.dtype)


def _round_up(x, m):
    return ((x + m - 1) // m) * m


def _cdiv(a, b):
    return -(-a // b)


@functools.partial(jax.jit, static_argnames=("pool",))
def downpool_forward(x, v_weight, g_weight, bias, *, pool):
    """x: (B, H, L) float32 -> (B, H*expand, ceil(L/pool)) float32."""
    B, H, L = x.shape
    d_out, U = v_weight.shape
    assert U == H * pool, (U, H, pool)

    # Output length (PyTorch except-branch pads L up to a pool multiple).
    Lp = _cdiv(L, pool)

    # ---- lane-tile selection (VMEM budget includes the resident weight) ----
    w_bytes = d_out * U * 4
    per_lane = 8 * (U + d_out)                       # double-buffered f32 x/out cols
    avail = max(_TILE_VMEM_BUDGET - 2 * w_bytes, per_lane * _LANE)
    tn_cap = max(_LANE, (avail // per_lane) // _LANE * _LANE)
    tn_max = min(_MAX_TILE_N, tn_cap, max(_LANE, (Lp // _LANE) * _LANE))
    n_tiles = _cdiv(Lp, tn_max)
    if B * n_tiles < 2 and Lp > _LANE:               # keep v7x's 2nd TC busy
        n_tiles = 2
    # Balance tile sizes across steps (never larger than tn_max, >= 128 lanes).
    tn = min(tn_max, max(_LANE, _round_up(_cdiv(Lp, n_tiles), _LANE)))

    # Array length along the pooled axis.  Padding beyond the pool multiple
    # only happens for tiny inputs (Lp < 128); common case: no jnp.pad copy.
    lp_arr = max(Lp, tn)
    pad_L = lp_arr * pool - L
    if pad_L:
        x = jnp.pad(x, ((0, 0), (0, 0), (0, pad_L)))

    # rearrange '... h (l s) -> ... (h s) l' (single XLA transpose; see TODO).
    x_r = (
        x.reshape(B, H, lp_arr, pool)
        .transpose(0, 1, 3, 2)
        .reshape(B, U, lp_arr)
    )

    # weight_norm(dim=0): W_eff[v, :] = g[v] * V[v, :] / ||V[v, :]||  (tiny, once).
    norm = jnp.sqrt(jnp.sum(v_weight * v_weight, axis=1, keepdims=True))
    w_eff = (v_weight * (g_weight.reshape(d_out, 1) / norm)).astype(jnp.float32)
    b2 = bias.reshape(d_out, 1).astype(jnp.float32)

    # Explicit scoped-VMEM limit: double-buffered tiles + resident weight + slack.
    vmem_need = per_lane * tn + 2 * w_bytes + (2 << 20)
    vmem_limit = int(min(52 << 20, max(32 << 20, vmem_need + (4 << 20))))

    grid = (B, _cdiv(lp_arr, tn))
    out = pl.pallas_call(
        _downpool_kernel,
        out_shape=jax.ShapeDtypeStruct((B, d_out, lp_arr), jnp.float32),
        grid=grid,
        in_specs=[
            pl.BlockSpec((d_out, U), lambda b, j: (0, 0)),          # W_eff (resident)
            pl.BlockSpec((d_out, 1), lambda b, j: (0, 0)),          # bias (resident)
            pl.BlockSpec((None, U, tn), lambda b, j: (b, 0, j)),    # x tile
        ],
        out_specs=pl.BlockSpec((None, d_out, tn), lambda b, j: (b, 0, j)),
        compiler_params=pltpu.CompilerParams(
            dimension_semantics=("parallel", "parallel"),
            vmem_limit_bytes=vmem_limit,
            allow_input_fusion=[False, False, True],
        ),
    )(w_eff, b2, x_r)

    return out[:, :, :Lp] if lp_arr != Lp else out


if __name__ == "__main__":
    # Module hyper-params (small, consistent with DownPool.__init__)
    B, d_input, L = 2, 4, 16
    expand, pool = 2, 4
    d_output = d_input * expand           # 8
    d_in_pool = d_input * pool            # 16

    key = jax.random.PRNGKey(0)
    k_x, k_v, k_g, k_b = jax.random.split(key, 4)

    x = jax.random.normal(k_x, (B, d_input, L), dtype=jnp.float32)
    v_weight = jax.random.normal(k_v, (d_output, d_in_pool), dtype=jnp.float32) * 0.1
    g_weight = jax.random.normal(k_g, (d_output,), dtype=jnp.float32) * 0.5 + 1.0
    bias = jax.random.normal(k_b, (d_output,), dtype=jnp.float32) * 0.1

    def reference(xx, v_w, g_w, b, pool):
        Bb, Hh, Ll = xx.shape
        p = (-Ll) % pool
        if p:
            xx = jnp.pad(xx, ((0, 0), (0, 0), (0, p)))
        Lp = (Ll + p) // pool
        x_r = (
            xx.reshape(Bb, Hh, Lp, pool).transpose(0, 1, 3, 2)
            .reshape(Bb, Hh * pool, Lp)
        )
        norm = jnp.sqrt(jnp.sum(v_w * v_w, axis=1, keepdims=True))
        w_eff = (g_w.reshape(-1, 1) / norm) * v_w
        return jnp.einsum("vu,bul->bvl", w_eff, x_r) + b.reshape(1, -1, 1)

    # Case 1: L divisible by pool (the normal `try` path).
    out = jax.block_until_ready(
        downpool_forward(x, v_weight, g_weight, bias, pool=pool))
    ref = reference(x, v_weight, g_weight, bias, pool)
    assert out.shape == (B, d_output, L // pool), out.shape
    assert jnp.allclose(out, ref, atol=1e-5, rtol=1e-5)

    # Case 2: L not divisible by pool (exercises the padding `except` path).
    x2 = x[:, :, : L - 2]
    out2 = jax.block_until_ready(
        downpool_forward(x2, v_weight, g_weight, bias, pool=pool))
    ref2 = reference(x2, v_weight, g_weight, bias, pool)
    assert out2.shape == (B, d_output, -(-(L - 2) // pool)), out2.shape
    assert jnp.allclose(out2, ref2, atol=1e-5, rtol=1e-5)

    print("KERNEL_OK")
</pallas_src>

<mosaic_0001>
module attributes {stable_mosaic.version = 11 : i64} {
  func.func @_downpool_kernel(%arg0: i32, %arg1: i32, %arg2: memref<8x16xf32, #tpu.memory_space<vmem>>, %arg3: memref<8x1xf32, #tpu.memory_space<vmem>>, %arg4: memref<1x16x128xf32, #tpu.memory_space<vmem>>, %arg5: memref<1x8x128xf32, #tpu.memory_space<vmem>>) attributes {dimension_semantics = [#tpu.dimension_semantics<parallel>, #tpu.dimension_semantics<parallel>], iteration_bounds = array<i64: 2, 1>, scalar_prefetch = 0 : i64, scratch_operands = 0 : i64, tpu.core_type = #tpu.core_type<tc>, window_params = [{pipeline_mode = #tpu.pipeline_mode<synchronous>, transform_indices = @transform_0, window_bounds = array<i64: 8, 16>}, {pipeline_mode = #tpu.pipeline_mode<synchronous>, transform_indices = @transform_1, window_bounds = array<i64: 8, 1>}, {transform_indices = @transform_2, window_bounds = array<i64: 1, 16, 128>}, {transform_indices = @transform_3, window_bounds = array<i64: 1, 8, 128>}]} {
    %c0 = arith.constant 0 : index
    %c0_0 = arith.constant 0 : index
    %0 = vector.load %arg2[%c0, %c0_0] : memref<8x16xf32, #tpu.memory_space<vmem>>, vector<8x16xf32>
    %c0_1 = arith.constant 0 : index
    %c0_2 = arith.constant 0 : index
    %c0_3 = arith.constant 0 : index
    %1 = vector.load %arg4[%c0_1, %c0_2, %c0_3] : memref<1x16x128xf32, #tpu.memory_space<vmem>>, vector<1x16x128xf32>
    %2 = vector.shape_cast %1 : vector<1x16x128xf32> to vector<16x128xf32>
    %cst = arith.constant dense<0.000000e+00> : vector<8x128xf32>
    %3 = tpu.matmul %0, %2, %cst {dimension_numbers = #tpu.dot_dimension_numbers<[1], [0], [0], [1], [0, 0, 1, 1], [], []>} : vector<8x16xf32>, vector<16x128xf32>, vector<8x128xf32> -> vector<8x128xf32>
    %c0_4 = arith.constant 0 : index
    %c0_5 = arith.constant 0 : index
    %4 = vector.load %arg3[%c0_4, %c0_5] : memref<8x1xf32, #tpu.memory_space<vmem>>, vector<8x1xf32>
    %5 = vector.broadcast %4 : vector<8x1xf32> to vector<8x128xf32>
    %6 = arith.addf %3, %5 : vector<8x128xf32>
    %c0_6 = arith.constant 0 : index
    %c0_7 = arith.constant 0 : index
    %c0_8 = arith.constant 0 : index
    %7 = vector.load %arg5[%c0_6, %c0_7, %c0_8] : memref<1x8x128xf32, #tpu.memory_space<vmem>>, vector<1x8x128xf32>
    %8 = vector.shape_cast %7 : vector<1x8x128xf32> to vector<8x128xf32>
    %9 = vector.shape_cast %6 : vector<8x128xf32> to vector<1x8x128xf32>
    tpu.vector_store %arg5[%c0_6, %c0_7, %c0_8], %9 {strides = array<i32>} : memref<1x8x128xf32, #tpu.memory_space<vmem>>, vector<1x8x128xf32>,
    return
  }
  func.func @transform_0(%arg0: i32, %arg1: i32) -> (i32, i32) {
    %c0_i32 = arith.constant 0 : i32
    %c0_i32_0 = arith.constant 0 : i32
    %c0_i32_1 = arith.constant 0 : i32
    return %c0_i32, %c0_i32_0 : i32, i32
  }
  func.func @transform_1(%arg0: i32, %arg1: i32) -> (i32, i32) {
    %c0_i32 = arith.constant 0 : i32
    %c0_i32_0 = arith.constant 0 : i32
    %c0_i32_1 = arith.constant 0 : i32
    return %c0_i32, %c0_i32_0 : i32, i32
  }
  func.func @transform_2(%arg0: i32, %arg1: i32) -> (i32, i32, i32) {
    %c0_i32 = arith.constant 0 : i32
    %c0_i32_0 = arith.constant 0 : i32
    return %arg0, %c0_i32, %arg1 : i32, i32, i32
  }
  func.func @transform_3(%arg0: i32, %arg1: i32) -> (i32, i32, i32) {
    %c0_i32 = arith.constant 0 : i32
    %c0_i32_0 = arith.constant 0 : i32
    return %arg0, %c0_i32, %arg1 : i32, i32, i32
  }
}

</mosaic_0001>

<llo_original>
// kernel: downpool_forward.1
$region0: #{downpool_forward.1}
  #allocation0 [shape = 'u32[]', space=smem, size = 0x4, offset = 0x4, fixed_abs, tag = 'smem constant byte address 0x4 - core index']
  #allocation1 [shape = 'u32[144,128]{1,0:T(1,128)}', space=vmem, size = 0x12000, scoped, tag = 'internal scratch']
  %s0 = inlined_call_operand.vmem [shape: f32[8,16], index: 0, kind: input, shape index: {}]
  %s1 = inlined_call_operand.vmem [shape: f32[8,1], index: 1, kind: input, shape index: {}]
  %s2 = inlined_call_operand.vmem [shape: f32[2,16,128], index: 2, kind: input, shape index: {}]
  %s3 = inlined_call_operand.vmem [shape: f32[2,8,128], index: 3, kind: output, shape index: {}]
  %s4 = sld [smem:[#allocation0]]
  $region45: #{downpool_forward.1} parent=0
    _
  %s6 = ssub.s32 1, %s4
  %s7 = scalar_select 0, %s6, %s4
  loop: start=0, step=1, limit=4
  $region2: #{downpool_forward.1} parent=0 // loop_pre_header
    _
  $region3: #{downpool_forward.1} parent=0 // loop_header
    %s9 = sphi 0, %s13
    %p10 = scmp.ge.s32.totalorder %s9, 4
    %s16 = sphi 0, %s28
    %s17 = sphi 0, %s24
    %s18 = sphi 0, %s16
    %s19 = sphi 0, %s17
    %s20 = sphi 0, %s18
    %s21 = sphi 0, %s19
    %s29 = sphi 0, %s29
    %s31 = sphi 0, %s29
    %s32 = sphi 0, %s31
    %s46 = sphi 0, %s32
    %s50 = sphi 0, %s50
    %s52 = sphi 0, %s50
    %s53 = sphi 0, %s52
    %s67 = sphi 0, %s53
    %s75 = sphi 0, %s77
    %s78 = sphi 0, %s75
    %s79 = sphi 0, %s78
    %s95 = sphi 0, %s79
    %s103 = sphi 0, %s105
    %s106 = sphi 0, %s103
    %s107 = sphi 0, %s106
    %s123 = sphi 0, %s107
  $region4: #{downpool_forward.1} parent=0 // loop_header_branch
    %12 = sbr.rel (%p10) target = $region8
  $region5: #{downpool_forward.1} parent=0 // loop_body
    %s14 = ssub.s32 %s9, 1
    %s15 = ssub.s32 %s9, 2
    %s22 = sadd.s32 1, %s17
    %p23 = scmp.ge.s32.totalorder %s22, 1
    %s24 = scalar_select %p23, 0, %s22
    %s25 = sadd.s32 1, %s16
    %s26 = scalar_select %p23, %s25, %s16
    %p27 = scmp.ge.s32.totalorder %s26, 2
    %s28 = scalar_select %p27, 0, %s26
    %s30 = sadd.s32 %s29, 1
    %p33 = scmp.eq.s32.totalorder %s9, 1
    %p34 = scmp.ne.s32.totalorder %s29, %s31
    %p35 = scmp.eq.s32.totalorder %s9, 0
    %p36 = por %p34, %p35
    %p37 = scmp.ne.s32.totalorder %s29, %s31
    %p38 = scmp.eq.s32.totalorder %s14, 1
    %p39 = por %p37, %p38
    %p40 = scmp.ne.s32.totalorder %s31, %s32
    %p41 = scmp.eq.s32.totalorder %s14, 0
    %p42 = por %p40, %p41
    %p43 = scmp.ne.s32.totalorder %s31, %s32
    %p44 = scmp.eq.s32.totalorder %s15, 1
    %p45 = por %p43, %p44
    %p47 = scmp.ne.s32.totalorder %s32, %s46
    %p48 = scmp.eq.s32.totalorder %s15, 0
    %p49 = por %p47, %p48
    %s51 = sadd.s32 %s50, 1
    %p54 = scmp.eq.s32.totalorder %s9, 1
    %p55 = scmp.ne.s32.totalorder %s50, %s52
    %p56 = scmp.eq.s32.totalorder %s9, 0
    %p57 = por %p55, %p56
    %p58 = scmp.ne.s32.totalorder %s50, %s52
    %p59 = scmp.eq.s32.totalorder %s14, 1
    %p60 = por %p58, %p59
    %p61 = scmp.ne.s32.totalorder %s52, %s53
    %p62 = scmp.eq.s32.totalorder %s14, 0
    %p63 = por %p61, %p62
    %p64 = scmp.ne.s32.totalorder %s52, %s53
    %p65 = scmp.eq.s32.totalorder %s15, 1
    %p66 = por %p64, %p65
    %p68 = scmp.ne.s32.totalorder %s53, %s67
    %p69 = scmp.eq.s32.totalorder %s15, 0
    %p70 = por %p68, %p69
    %s71 = ssub.s32 %s16, %s28
    %s72 = ssub.s32 %s17, %s24
    %s73 = sor.u32 %s71, %s72
    %p74 = scmp.eq.s32.totalorder %s73, 0
    %s76 = sadd.s32 %s75, 1
    %s77 = scalar_select %p74, %s75, %s76
    %p80 = pneg %p74
    %p81 = scmp.eq.s32.totalorder %s9, 1
    %p82 = por %p80, %p81
    %p83 = scmp.ne.s32.totalorder %s75, %s78
    %p84 = scmp.eq.s32.totalorder %s9, 0
    %p85 = por %p83, %p84
    %p86 = scmp.ne.s32.totalorder %s75, %s78
    %p87 = scmp.eq.s32.totalorder %s14, 1
    %p88 = por %p86, %p87
    %p89 = scmp.ne.s32.totalorder %s78, %s79
    %p90 = scmp.eq.s32.totalorder %s14, 0
    %p91 = por %p89, %p90
    %p92 = scmp.ne.s32.totalorder %s78, %s79
    %p93 = scmp.eq.s32.totalorder %s15, 1
    %p94 = por %p92, %p93
    %p96 = scmp.ne.s32.totalorder %s79, %s95
    %p97 = scmp.eq.s32.totalorder %s15, 0
    %p98 = por %p96, %p97
    %s99 = ssub.s32 %s16, %s28
    %s100 = ssub.s32 %s17, %s24
    %s101 = sor.u32 %s99, %s100
    %p102 = scmp.eq.s32.totalorder %s101, 0
    %s104 = sadd.s32 %s103, 1
    %s105 = scalar_select %p102, %s103, %s104
    %p108 = pneg %p102
    %p109 = scmp.eq.s32.totalorder %s9, 1
    %p110 = por %p108, %p109
    %p111 = scmp.ne.s32.totalorder %s103, %s106
    %p112 = scmp.eq.s32.totalorder %s9, 0
    %p113 = por %p111, %p112
    %p114 = scmp.ne.s32.totalorder %s103, %s106
    %p115 = scmp.eq.s32.totalorder %s14, 1
    %p116 = por %p114, %p115
    %p117 = scmp.ne.s32.totalorder %s106, %s107
    %p118 = scmp.eq.s32.totalorder %s14, 0
    %p119 = por %p117, %p118
    %p120 = scmp.ne.s32.totalorder %s106, %s107
    %p121 = scmp.eq.s32.totalorder %s15, 1
    %p122 = por %p120, %p121
    %p124 = scmp.ne.s32.totalorder %s107, %s123
    %p125 = scmp.eq.s32.totalorder %s15, 0
    %p126 = por %p124, %p125
    %p127 = scmp.le.s32.totalorder 1, %s9
    %p128 = scmp.lt.s32.totalorder %s9, 3
    %p129 = pnand %p127, %p128
    %p130 = pneg %p129
    // Predicated region
    $region9: #{downpool_forward.1} parent=5 // pred_check
      _
    $region10: #{downpool_forward.1} parent=5 // pred_check_branch
      %132 = sbr.rel (%p129) target = $region12
    $region11: #{downpool_forward.1} parent=5 // pred_region
      %s133 = ssub.s32 %s9, 1
      // Predicated region
      $region13: #{downpool_forward.1} parent=11 // pred_check
        %p134 = pneg %p42
      $region14: #{downpool_forward.1} parent=11 // pred_check_branch
        %136 = sbr.rel (%p134) target = $region16
      $region15: #{downpool_forward.1} parent=11 // pred_region
        _
      $region16: #{downpool_forward.1} parent=11 // pred_fallthru
        _
      // Predicated region
      $region17: #{downpool_forward.1} parent=11 // pred_check
        %p137 = pneg %p63
      $region18: #{downpool_forward.1} parent=11 // pred_check_branch
        %139 = sbr.rel (%p137) target = $region20
      $region19: #{downpool_forward.1} parent=11 // pred_region
        _
      $region20: #{downpool_forward.1} parent=11 // pred_fallthru
        _
    $region12: #{downpool_forward.1} parent=5 // pred_fallthru
      _
    %p140 = scmp.lt.s32.totalorder %s9, 2
    // Predicated region
    $region21: #{downpool_forward.1} parent=5 // pred_check
      %p141 = pneg %p140
    $region22: #{downpool_forward.1} parent=5 // pred_check_branch
      %143 = sbr.rel (%p141) target = $region24
    $region23: #{downpool_forward.1} parent=5 // pred_region
      // Predicated region
      $region25: #{downpool_forward.1} parent=23 // pred_check
        %p144 = pneg %p85
      $region26: #{downpool_forward.1} parent=23 // pred_check_branch
        %146 = sbr.rel (%p144) target = $region28
      $region27: #{downpool_forward.1} parent=23 // pred_region
        %p147 = scmp.lt.s32.totalorder %s16, 1
        %s148 = scalar_select %p147, %s16, 1
        %p149 = scmp.lt.s32.totalorder %s17, 0
        %s150 = scalar_select %p149, %s17, 0
        %s151 = smul.addr %s148, 2
        %s152 = sadd.s32 %s150, %s151
        %s153 = smul.addr %s152, 8
        %s154 = scalar_lea.vmem %s2, %s153
      $region28: #{downpool_forward.1} parent=23 // pred_fallthru
        _
    $region24: #{downpool_forward.1} parent=5 // pred_fallthru
      _
    %p155 = scmp.le.s32.totalorder 1, %s9
    %p156 = scmp.lt.s32.totalorder %s9, 3
    %p157 = pnand %p155, %p156
    %p158 = pneg %p157
    // Predicated region
    $region29: #{downpool_forward.1} parent=5 // pred_check
      _
    $region30: #{downpool_forward.1} parent=5 // pred_check_branch
      %160 = sbr.rel (%p157) target = $region32
    $region31: #{downpool_forward.1} parent=5 // pred_region
      %s161 = ssub.s32 %s9, 1
      %p162 = pneg %p42
      %p163 = pneg %p39
      %p164 = pneg %p63
      %p165 = pneg %p60
      %p166 = scmp.lt.s32.totalorder %s18, 1
      %s167 = scalar_select %p166, %s18, 1
      %p168 = scmp.lt.s32.totalorder %s19, 0
      %s169 = scalar_select %p168, %s19, 0
      %s170 = smul.addr %s167, 2
      %s171 = sadd.s32 %s169, %s170
      %s172 = smul.addr %s171, 8
      %s173 = scalar_lea.vmem %s2, %s172
      %p174 = pneg %p91
      %p175 = pneg %p88
      %p176 = pneg %p119
      %p177 = pneg %p116
      %p178 = scmp.lt.s32.totalorder %s18, 1
      %s179 = scalar_select %p178, %s18, 1
      %p180 = scmp.lt.s32.totalorder %s19, 0
      %s181 = scalar_select %p180, %s19, 0
      %s182 = sadd.s32 %s181, %s179
      %s183 = smul.addr %s182, 8
      %s184 = scalar_lea.vmem %s3, %s183
      %p185 = scmp.lt.s32.totalorder %s18, 1
      %s186 = scalar_select %p185, %s18, 1
      %p187 = scmp.lt.s32.totalorder %s19, 0
      %s188 = scalar_select %p187, %s19, 0
      %s189 = smul.addr %s186, 2
      %s190 = sadd.s32 %s188, %s189
      %s191 = smul.addr %s190, 8
      %s192 = scalar_lea.vmem %s2, %s191
      %p193 = scmp.lt.s32.totalorder %s18, 1
      %s194 = scalar_select %p193, %s18, 1
      %p195 = scmp.lt.s32.totalorder %s19, 0
      %s196 = scalar_select %p195, %s19, 0
      %s197 = sadd.s32 %s196, %s194
      %s198 = smul.addr %s197, 8
      %s199 = scalar_lea.vmem %s3, %s198
      %v200 = vld [vmem:[%s0] sm:$0xff]
      %v201 = vld [vmem:[%s192] sm:$0xff]
      %v202 = vld [vmem:[%s192 + $0x8] sm:$0xff]
      %v203 = vld [vmem:[%s1] sm:$0xff]
      %205 = vset.pattern.permute.xlu0 0
      %206 = vperm.xlu0 %205, %v203
      %v207 = vpop.permute.xlu0 %206
      %vm209 = vcmask 130048
      %v211 = vsel %vm209, %v200, 0
      %213 = vmatprep.subr.mxu0 0.0
      %214 = vmatpush1.msra.mxu0 %v201
      %215 = vmatprep.subr.mxu0 0.0
      %216 = vmatpush1.msra.mxu0 %v202
      %217 = vmatprep.subr.mxu0 0.0
      %218 = vmatpush1.msra.mxu0 0.0
      %219 = vmatprep.subr.mxu0 0.0
      %220 = vmatpush1.msra.mxu0 0.0
      %221 = vmatprep.subr.mxu0 0.0
      %222 = vmatpush1.msra.mxu0 0.0
      %223 = vmatprep.subr.mxu0 0.0
      %224 = vmatpush1.msra.mxu0 0.0
      %225 = vmatprep.subr.mxu0 0.0
      %226 = vmatpush1.msra.mxu0 0.0
      %227 = vmatprep.subr.mxu0 0.0
      %228 = vmatpush1.msra.mxu0 0.0
      %229 = vmatprep.subr.mxu0 0.0
      %230 = vmatpush1.msra.mxu0 0.0
      %231 = vmatprep.subr.mxu0 0.0
      %232 = vmatpush1.msra.mxu0 0.0
      %233 = vmatprep.subr.mxu0 0.0
      %234 = vmatpush1.msra.mxu0 0.0
      %235 = vmatprep.subr.mxu0 0.0
      %236 = vmatpush1.msra.mxu0 0.0
      %237 = vmatprep.subr.mxu0 0.0
      %238 = vmatpush1.msra.mxu0 0.0
      %239 = vmatprep.subr.mxu0 0.0
      %240 = vmatpush1.msra.mxu0 0.0
      %241 = vmatprep.subr.mxu0 0.0
      %242 = vmatpush1.msra.mxu0 0.0
      %243 = vmatprep.subr.mxu0 0.0
      %244 = vmatpush1.msra.mxu0 0.0
      %245 = vmatprep.subr.mxu0 0.0
      %246 = vmatpush1.msra.mxu0 0.0
      %247 = vmatprep.subr.mxu0 0.0
      %248 = vmatpush1.msra.mxu0 0.0
      %249 = vmatprep.subr.mxu0 0.0
      %250 = vmatpush1.msra.mxu0 0.0
      %251 = vmatprep.subr.mxu0 0.0
      %252 = vmatpush1.msra.mxu0 0.0
      %253 = vmatprep.subr.mxu0 0.0
      %254 = vmatpush1.msra.mxu0 0.0
      %255 = vmatprep.subr.mxu0 0.0
      %256 = vmatpush1.msra.mxu0 0.0
      %257 = vmatprep.subr.mxu0 0.0
      %258 = vmatpush1.msra.mxu0 0.0
      %259 = vmatprep.subr.mxu0 0.0
      %260 = vmatpush1.msra.mxu0 0.0
      %261 = vmatprep.subr.mxu0 0.0
      %262 = vmatpush1.msra.mxu0 0.0
      %263 = vmatprep.subr.mxu0 0.0
      %264 = vmatpush1.msra.mxu0 0.0
      %265 = vmatprep.subr.mxu0 0.0
      %266 = vmatpush1.msra.mxu0 0.0
      %267 = vmatprep.subr.mxu0 0.0
      %268 = vmatpush1.msra.mxu0 0.0
      %269 = vmatprep.subr.mxu0 0.0
      %270 = vmatpush1.msra.mxu0 0.0
      %271 = vmatprep.subr.mxu0 0.0
      %272 = vmatpush1.msra.mxu0 0.0
      %273 = vmatprep.subr.mxu0 0.0
      %274 = vmatpush1.msra.mxu0 0.0
      %275 = vmatprep.subr.mxu0 0.0
      %276 = vmatpush1.msra.mxu0 0.0
      %277 = vmatprep.mubr.f32.mxu0 0.0
      %278 = vmatmul.mubr.f32.gmra.mrb[0].mxu0 %v211
      %v279 = vpop.f32.mrb[0].mxu0
      %v280 = vadd.f32 %v207, %v279
      %v281 = vpop.f32.mrb[0].mxu0
      %282 = vdwg.mxu0
      %283 = vst [vmem:[%s199] sm:$0xff] %v280
      %p284 = scmp.lt.s32.totalorder %s18, 1
      %s285 = scalar_select %p284, %s18, 1
      %p286 = scmp.lt.s32.totalorder %s19, 0
      %s287 = scalar_select %p286, %s19, 0
      %s288 = sadd.s32 %s287, %s285
      %s289 = smul.addr %s288, 8
      %s290 = scalar_lea.vmem %s3, %s289
      // Predicated region
      $region33: #{downpool_forward.1} parent=31 // pred_check
        %p291 = pneg %p116
      $region34: #{downpool_forward.1} parent=31 // pred_check_branch
        %293 = sbr.rel (%p291) target = $region36
      $region35: #{downpool_forward.1} parent=31 // pred_region
        _
      $region36: #{downpool_forward.1} parent=31 // pred_fallthru
        _
    $region32: #{downpool_forward.1} parent=5 // pred_fallthru
      _
    %p294 = scmp.le.s32.totalorder 2, %s9
    // Predicated region
    $region37: #{downpool_forward.1} parent=5 // pred_check
      %p295 = pneg %p294
    $region38: #{downpool_forward.1} parent=5 // pred_check_branch
      %297 = sbr.rel (%p295) target = $region40
    $region39: #{downpool_forward.1} parent=5 // pred_region
      %s298 = ssub.s32 %s9, 2
      // Predicated region
      $region41: #{downpool_forward.1} parent=39 // pred_check
        %p299 = pneg %p122
      $region42: #{downpool_forward.1} parent=39 // pred_check_branch
        %301 = sbr.rel (%p299) target = $region44
      $region43: #{downpool_forward.1} parent=39 // pred_region
        %p302 = scmp.lt.s32.totalorder %s20, 1
        %s303 = scalar_select %p302, %s20, 1
        %p304 = scmp.lt.s32.totalorder %s21, 0
        %s305 = scalar_select %p304, %s21, 0
        %s306 = sadd.s32 %s305, %s303
        %s307 = smul.addr %s306, 8
        %s308 = scalar_lea.vmem %s3, %s307
      $region44: #{downpool_forward.1} parent=39 // pred_fallthru
        _
    $region40: #{downpool_forward.1} parent=5 // pred_fallthru
      _
  $region6: #{downpool_forward.1} parent=0 // loop_footer
    %s13 = sadd.s32 1, %s9
  $region7: #{downpool_forward.1} parent=0 // loop_footer_branch
    %8 = sbr.rel target = $region3
  $region8: #{downpool_forward.1} parent=0 // loop_exit
    _

</llo_original>
